<compile_context>
chip_gen: v7x
topology: tpu7x:2x2x1
jax: 0.10.0
libtpu: 0.0.40
codegen_flags: <defaults>
</compile_context>

<pallas_src>
import functools
import math

import jax
import jax.numpy as jnp
from jax import lax
from jax.experimental import pallas as pl
from jax.experimental.pallas import tpu as pltpu

SEC_PER_HR = 60.0 * 60.0

# CSTRParameters(integration_method='rk4')
V = 20.0
K_RATE = 300.0 / SEC_PER_HR
N_E = 5.0
T_F = 0.3947
ALPHA_C = 0.000195
T_C = 0.3816
STEP_SIZE = SEC_PER_HR  # odeint_options = dict(step_size=SEC_PER_HR)

LANES = 128                       # vreg lane width
SUBLANES_PER_VAR = 32             # 4 full (8,128) vregs per state variable per tile
PER_TILE = SUBLANES_PER_VAR * LANES   # 4096 trajectories per grid tile
UNROLL_CAP = 32                   # full trace-time unroll up to this many RK4 steps


def _fixed_grid_dts(delta_t):
    """torchdiffeq fixed-grid constructor: t_i = i*step_size, last point := delta_t."""
    niters = int(math.ceil(float(delta_t) / STEP_SIZE + 1.0))
    ts = [i * STEP_SIZE for i in range(niters)]
    ts[-1] = float(delta_t)
    return tuple(ts[i + 1] - ts[i] for i in range(niters - 1))


def _make_cstr_kernel(dts):
    """Build a kernel with the dt schedule baked in."""
    dts = tuple(float(dt) for dt in dts)
    third = 1.0 / 3.0
    S = SUBLANES_PER_VAR

    def kernel(xu_ref, out_ref):
        # xu_ref: (4*S, 128) f32; rows [0,S)=c, [S,2S)=T, [2S,3S)=roh, [3S,4S)=Fc.
        # Each variable is S/8 full (8,128) vregs -> independent per-vreg EUP
        # chains the scheduler interleaves into the exp pipeline.
        c = xu_ref[0 * S:1 * S, :]
        T = xu_ref[1 * S:2 * S, :]
        roh = xu_ref[2 * S:3 * S, :]
        fc = xu_ref[3 * S:4 * S, :]

        # Loop/stage-invariant products, hoisted once.
        roh_over_V = roh * (1.0 / V)
        fc_alpha = fc * ALPHA_C

        def ode(c, T):
            # Exact f32 divide kept (exp amplifies recip error ~N/T near T~0.39);
            # the c*r Arrhenius product is shared between dc and dT.
            r = K_RATE * jnp.exp(-N_E / T)
            cr = c * r
            dc = (1.0 - c) * roh_over_V - cr
            dT = (T_F - T) * roh_over_V + cr - fc_alpha * (T - T_C)
            return dc, dT

        def rk4_step(c, T, dt):
            # torchdiffeq fixed-grid 'rk4' = 3/8-rule (rk4_alt_step_func).
            # dt is a Python float -> dt/3, dt/8 fold to immediates at trace time.
            k1c, k1T = ode(c, T)
            k2c, k2T = ode(c + (dt * third) * k1c, T + (dt * third) * k1T)
            k3c, k3T = ode(c + dt * (k2c - third * k1c),
                           T + dt * (k2T - third * k1T))
            k4c, k4T = ode(c + dt * (k1c - k2c + k3c),
                           T + dt * (k1T - k2T + k3T))
            c = c + (dt * 0.125) * (k1c + 3.0 * (k2c + k3c) + k4c)
            T = T + (dt * 0.125) * (k1T + 3.0 * (k2T + k3T) + k4T)
            return c, T

        n = len(dts)
        uniform_prefix = all(dt == dts[0] for dt in dts[:-1]) if n > 1 else True
        if n <= UNROLL_CAP or not uniform_prefix:
            # Short / irregular horizon: fully unrolled at trace time.
            for dt in dts:
                c, T = rk4_step(c, T, dt)
        else:
            # Long uniform horizon: capped unroll via fori_loop, peel the last
            # (possibly irregular) dt.
            dt0 = dts[0]

            def body(_, carry):
                cc, TT = carry
                return rk4_step(cc, TT, dt0)

            c, T = lax.fori_loop(0, n - 1, body, (c, T), unroll=8)
            c, T = rk4_step(c, T, dts[-1])

        # Single stacked (2*S, 128) unmasked store: rows [0,S)=c(dt), [S,2S)=T(dt).
        out_ref[...] = jnp.concatenate([c, T], axis=0)

    return kernel


def _pack(X0, U, num_tiles):
    """(B,2)+(B,2) -> (num_tiles*4*S, 128) var-major sublane/lane-packed tile stack."""
    B = X0.shape[0]
    b_pad = num_tiles * PER_TILE
    # rows = [c, T, roh, Fc]; padded trajectories are all-zero -> inert
    # (exp(-N/0) = exp(-inf) = 0, all derivatives 0).
    vars_ = jnp.concatenate([X0, U], axis=1).T.astype(jnp.float32)   # (4, B)
    vars_ = jnp.pad(vars_, ((0, 0), (0, b_pad - B)))
    vars_ = vars_.reshape(4, num_tiles, SUBLANES_PER_VAR, LANES)
    return vars_.transpose(1, 0, 2, 3).reshape(num_tiles * 4 * SUBLANES_PER_VAR, LANES)


def _unpack(out, B, num_tiles):
    """(num_tiles*2*S, 128) -> (B, 2) [c(dt), T(dt)]."""
    out = out.reshape(num_tiles, 2, SUBLANES_PER_VAR, LANES)
    out = out.transpose(1, 0, 2, 3).reshape(2, num_tiles * PER_TILE)
    return out[:, :B].T


@functools.lru_cache(maxsize=None)
def _build_cstr_forward(dts, batch):
    """Memoized (dt schedule, batch) -> jitted pack + pallas_call + unpack."""
    num_tiles = max(1, (batch + PER_TILE - 1) // PER_TILE)
    kernel = _make_cstr_kernel(dts)

    call = pl.pallas_call(
        kernel,
        out_shape=jax.ShapeDtypeStruct(
            (num_tiles * 2 * SUBLANES_PER_VAR, LANES), jnp.float32),
        grid=(num_tiles,),
        in_specs=[pl.BlockSpec((4 * SUBLANES_PER_VAR, LANES), lambda i: (i, 0))],
        out_specs=pl.BlockSpec((2 * SUBLANES_PER_VAR, LANES), lambda i: (i, 0)),
        compiler_params=pltpu.CompilerParams(
            dimension_semantics=("parallel",)),  # shards tiles across v7x's 2 TCs
    )

    def fwd(X0, U):
        packed = _pack(X0, U, num_tiles)
        out = call(packed)
        return _unpack(out, batch, num_tiles)

    return jax.jit(fwd)


def cstr_forward_batched(X0, U, delta_t):
    """Batched CSTR forward: X0 (B, 2), U (B, 2) -> (B, 2) = [c(delta_t), T(delta_t)]."""
    X0 = jnp.asarray(X0, dtype=jnp.float32)
    U = jnp.asarray(U, dtype=jnp.float32)
    dts = _fixed_grid_dts(delta_t)
    return _build_cstr_forward(dts, int(X0.shape[0]))(X0, U)


def cstr_forward(X0, U, delta_t):
    """Equivalent of CSTR.forward(X0, U, delta_t) -> X1U[1, :2].

    delta_t must be a Python float (static solver parameter, as in the PyTorch
    module where it defines the odeint time grid).
    """
    X0 = jnp.asarray(X0, dtype=jnp.float32).reshape(1, 2)
    U = jnp.asarray(U, dtype=jnp.float32).reshape(1, 2)
    return cstr_forward_batched(X0, U, delta_t)[0]


def _cstr_reference(X0, U, delta_t):
    """Pure-JAX reference (same 3/8-rule RK4, same expression ordering)."""
    X0 = jnp.asarray(X0, dtype=jnp.float32)
    U = jnp.asarray(U, dtype=jnp.float32)
    c, T = X0[:, 0], X0[:, 1]
    roh, fc = U[:, 0], U[:, 1]
    roh_over_V = roh * (1.0 / V)
    fc_alpha = fc * ALPHA_C
    third = 1.0 / 3.0

    def ode(c, T):
        r = K_RATE * jnp.exp(-N_E / T)
        cr = c * r
        dc = (1.0 - c) * roh_over_V - cr
        dT = (T_F - T) * roh_over_V + cr - fc_alpha * (T - T_C)
        return dc, dT

    for dt in _fixed_grid_dts(delta_t):
        k1c, k1T = ode(c, T)
        k2c, k2T = ode(c + (dt * third) * k1c, T + (dt * third) * k1T)
        k3c, k3T = ode(c + dt * (k2c - third * k1c), T + dt * (k2T - third * k1T))
        k4c, k4T = ode(c + dt * (k1c - k2c + k3c), T + dt * (k1T - k2T + k3T))
        c = c + (dt * 0.125) * (k1c + 3.0 * (k2c + k3c) + k4c)
        T = T + (dt * 0.125) * (k1T + 3.0 * (k2T + k3T) + k4T)
    return jnp.stack([c, T], axis=-1)


if __name__ == "__main__":
    key = jax.random.PRNGKey(0)
    k1, k2 = jax.random.split(key)

    # Small batch of trajectories around a physical operating point.
    B = 4
    X0 = jnp.array([0.5, 0.3947], dtype=jnp.float32) \
        + 0.01 * jax.random.normal(k1, (B, 2), dtype=jnp.float32)
    U = jnp.array([0.005, 0.1], dtype=jnp.float32) \
        * (1.0 + 0.01 * jax.random.normal(k2, (B, 2), dtype=jnp.float32))

    # Short horizon: fixed grid [0, 3600, 5400] -> two RK4 steps (fully unrolled).
    delta_t = 1.5 * SEC_PER_HR
    out = cstr_forward_batched(X0, U, delta_t)
    jax.block_until_ready(out)
    ref = _cstr_reference(X0, U, delta_t)
    assert out.shape == (B, 2)
    assert bool(jnp.all(jnp.isfinite(out)))
    assert bool(jnp.allclose(out, ref, rtol=1e-3, atol=1e-6))

    # Single-trajectory forward (exact module semantics).
    single = cstr_forward(X0[0], U[0], delta_t)
    jax.block_until_ready(single)
    assert single.shape == (2,)
    assert bool(jnp.allclose(single, ref[0], rtol=1e-3, atol=1e-6))

    # Long horizon (40 uniform hourly steps) exercises the capped-unroll
    # fori_loop path.
    delta_t_long = 40.0 * SEC_PER_HR
    out_long = cstr_forward_batched(X0, U, delta_t_long)
    jax.block_until_ready(out_long)
    ref_long = _cstr_reference(X0, U, delta_t_long)
    assert bool(jnp.all(jnp.isfinite(out_long)))
    assert bool(jnp.allclose(out_long, ref_long, rtol=1e-3, atol=1e-5))

    print("KERNEL_OK")
</pallas_src>

<mosaic_0001>
module attributes {stable_mosaic.version = 11 : i64} {
  func.func @kernel(%arg0: i32, %arg1: memref<128x128xf32, #tpu.memory_space<vmem>>, %arg2: memref<64x128xf32, #tpu.memory_space<vmem>>) attributes {dimension_semantics = [#tpu.dimension_semantics<parallel>], iteration_bounds = array<i64: 1>, scalar_prefetch = 0 : i64, scratch_operands = 0 : i64, tpu.core_type = #tpu.core_type<tc>, window_params = [{transform_indices = @transform_0, window_bounds = array<i64: 128, 128>}, {transform_indices = @transform_1, window_bounds = array<i64: 64, 128>}]} {
    %c0 = arith.constant 0 : index
    %c0_0 = arith.constant 0 : index
    %0 = vector.load %arg1[%c0, %c0_0] : memref<128x128xf32, #tpu.memory_space<vmem>>, vector<32x128xf32>
    %c32 = arith.constant 32 : index
    %c0_1 = arith.constant 0 : index
    %1 = vector.load %arg1[%c32, %c0_1] : memref<128x128xf32, #tpu.memory_space<vmem>>, vector<32x128xf32>
    %c64 = arith.constant 64 : index
    %c0_2 = arith.constant 0 : index
    %2 = vector.load %arg1[%c64, %c0_2] : memref<128x128xf32, #tpu.memory_space<vmem>>, vector<32x128xf32>
    %c96 = arith.constant 96 : index
    %c0_3 = arith.constant 0 : index
    %3 = vector.load %arg1[%c96, %c0_3] : memref<128x128xf32, #tpu.memory_space<vmem>>, vector<32x128xf32>
    %cst = arith.constant 5.000000e-02 : f32
    %4 = vector.broadcast %cst : f32 to vector<32x128xf32>
    %5 = arith.mulf %2, %4 : vector<32x128xf32>
    %cst_4 = arith.constant 1.950000e-04 : f32
    %6 = vector.broadcast %cst_4 : f32 to vector<32x128xf32>
    %7 = arith.mulf %3, %6 : vector<32x128xf32>
    %cst_5 = arith.constant -5.000000e+00 : f32
    %8 = vector.broadcast %cst_5 : f32 to vector<32x128xf32>
    %9 = arith.divf %8, %1 : vector<32x128xf32>
    %10 = math.exp %9 : vector<32x128xf32>
    %cst_6 = arith.constant 0.0833333358 : f32
    %11 = vector.broadcast %cst_6 : f32 to vector<32x128xf32>
    %12 = arith.mulf %11, %10 : vector<32x128xf32>
    %13 = arith.mulf %0, %12 : vector<32x128xf32>
    %cst_7 = arith.constant 1.000000e+00 : f32
    %14 = vector.broadcast %cst_7 : f32 to vector<32x128xf32>
    %15 = arith.subf %14, %0 : vector<32x128xf32>
    %16 = arith.mulf %15, %5 : vector<32x128xf32>
    %17 = arith.subf %16, %13 : vector<32x128xf32>
    %cst_8 = arith.constant 3.947000e-01 : f32
    %18 = vector.broadcast %cst_8 : f32 to vector<32x128xf32>
    %19 = arith.subf %18, %1 : vector<32x128xf32>
    %20 = arith.mulf %19, %5 : vector<32x128xf32>
    %21 = arith.addf %20, %13 : vector<32x128xf32>
    %cst_9 = arith.constant 3.816000e-01 : f32
    %22 = vector.broadcast %cst_9 : f32 to vector<32x128xf32>
    %23 = arith.subf %1, %22 : vector<32x128xf32>
    %24 = arith.mulf %7, %23 : vector<32x128xf32>
    %25 = arith.subf %21, %24 : vector<32x128xf32>
    %cst_10 = arith.constant 1.200000e+03 : f32
    %26 = vector.broadcast %cst_10 : f32 to vector<32x128xf32>
    %27 = arith.mulf %26, %17 : vector<32x128xf32>
    %28 = arith.addf %0, %27 : vector<32x128xf32>
    %cst_11 = arith.constant 1.200000e+03 : f32
    %29 = vector.broadcast %cst_11 : f32 to vector<32x128xf32>
    %30 = arith.mulf %29, %25 : vector<32x128xf32>
    %31 = arith.addf %1, %30 : vector<32x128xf32>
    %cst_12 = arith.constant -5.000000e+00 : f32
    %32 = vector.broadcast %cst_12 : f32 to vector<32x128xf32>
    %33 = arith.divf %32, %31 : vector<32x128xf32>
    %34 = math.exp %33 : vector<32x128xf32>
    %cst_13 = arith.constant 0.0833333358 : f32
    %35 = vector.broadcast %cst_13 : f32 to vector<32x128xf32>
    %36 = arith.mulf %35, %34 : vector<32x128xf32>
    %37 = arith.mulf %28, %36 : vector<32x128xf32>
    %cst_14 = arith.constant 1.000000e+00 : f32
    %38 = vector.broadcast %cst_14 : f32 to vector<32x128xf32>
    %39 = arith.subf %38, %28 : vector<32x128xf32>
    %40 = arith.mulf %39, %5 : vector<32x128xf32>
    %41 = arith.subf %40, %37 : vector<32x128xf32>
    %cst_15 = arith.constant 3.947000e-01 : f32
    %42 = vector.broadcast %cst_15 : f32 to vector<32x128xf32>
    %43 = arith.subf %42, %31 : vector<32x128xf32>
    %44 = arith.mulf %43, %5 : vector<32x128xf32>
    %45 = arith.addf %44, %37 : vector<32x128xf32>
    %cst_16 = arith.constant 3.816000e-01 : f32
    %46 = vector.broadcast %cst_16 : f32 to vector<32x128xf32>
    %47 = arith.subf %31, %46 : vector<32x128xf32>
    %48 = arith.mulf %7, %47 : vector<32x128xf32>
    %49 = arith.subf %45, %48 : vector<32x128xf32>
    %cst_17 = arith.constant 0.333333343 : f32
    %50 = vector.broadcast %cst_17 : f32 to vector<32x128xf32>
    %51 = arith.mulf %50, %17 : vector<32x128xf32>
    %52 = arith.subf %41, %51 : vector<32x128xf32>
    %cst_18 = arith.constant 3.600000e+03 : f32
    %53 = vector.broadcast %cst_18 : f32 to vector<32x128xf32>
    %54 = arith.mulf %53, %52 : vector<32x128xf32>
    %55 = arith.addf %0, %54 : vector<32x128xf32>
    %cst_19 = arith.constant 0.333333343 : f32
    %56 = vector.broadcast %cst_19 : f32 to vector<32x128xf32>
    %57 = arith.mulf %56, %25 : vector<32x128xf32>
    %58 = arith.subf %49, %57 : vector<32x128xf32>
    %cst_20 = arith.constant 3.600000e+03 : f32
    %59 = vector.broadcast %cst_20 : f32 to vector<32x128xf32>
    %60 = arith.mulf %59, %58 : vector<32x128xf32>
    %61 = arith.addf %1, %60 : vector<32x128xf32>
    %cst_21 = arith.constant -5.000000e+00 : f32
    %62 = vector.broadcast %cst_21 : f32 to vector<32x128xf32>
    %63 = arith.divf %62, %61 : vector<32x128xf32>
    %64 = math.exp %63 : vector<32x128xf32>
    %cst_22 = arith.constant 0.0833333358 : f32
    %65 = vector.broadcast %cst_22 : f32 to vector<32x128xf32>
    %66 = arith.mulf %65, %64 : vector<32x128xf32>
    %67 = arith.mulf %55, %66 : vector<32x128xf32>
    %cst_23 = arith.constant 1.000000e+00 : f32
    %68 = vector.broadcast %cst_23 : f32 to vector<32x128xf32>
    %69 = arith.subf %68, %55 : vector<32x128xf32>
    %70 = arith.mulf %69, %5 : vector<32x128xf32>
    %71 = arith.subf %70, %67 : vector<32x128xf32>
    %cst_24 = arith.constant 3.947000e-01 : f32
    %72 = vector.broadcast %cst_24 : f32 to vector<32x128xf32>
    %73 = arith.subf %72, %61 : vector<32x128xf32>
    %74 = arith.mulf %73, %5 : vector<32x128xf32>
    %75 = arith.addf %74, %67 : vector<32x128xf32>
    %cst_25 = arith.constant 3.816000e-01 : f32
    %76 = vector.broadcast %cst_25 : f32 to vector<32x128xf32>
    %77 = arith.subf %61, %76 : vector<32x128xf32>
    %78 = arith.mulf %7, %77 : vector<32x128xf32>
    %79 = arith.subf %75, %78 : vector<32x128xf32>
    %80 = arith.subf %17, %41 : vector<32x128xf32>
    %81 = arith.addf %80, %71 : vector<32x128xf32>
    %cst_26 = arith.constant 3.600000e+03 : f32
    %82 = vector.broadcast %cst_26 : f32 to vector<32x128xf32>
    %83 = arith.mulf %82, %81 : vector<32x128xf32>
    %84 = arith.addf %0, %83 : vector<32x128xf32>
    %85 = arith.subf %25, %49 : vector<32x128xf32>
    %86 = arith.addf %85, %79 : vector<32x128xf32>
    %cst_27 = arith.constant 3.600000e+03 : f32
    %87 = vector.broadcast %cst_27 : f32 to vector<32x128xf32>
    %88 = arith.mulf %87, %86 : vector<32x128xf32>
    %89 = arith.addf %1, %88 : vector<32x128xf32>
    %cst_28 = arith.constant -5.000000e+00 : f32
    %90 = vector.broadcast %cst_28 : f32 to vector<32x128xf32>
    %91 = arith.divf %90, %89 : vector<32x128xf32>
    %92 = math.exp %91 : vector<32x128xf32>
    %cst_29 = arith.constant 0.0833333358 : f32
    %93 = vector.broadcast %cst_29 : f32 to vector<32x128xf32>
    %94 = arith.mulf %93, %92 : vector<32x128xf32>
    %95 = arith.mulf %84, %94 : vector<32x128xf32>
    %cst_30 = arith.constant 1.000000e+00 : f32
    %96 = vector.broadcast %cst_30 : f32 to vector<32x128xf32>
    %97 = arith.subf %96, %84 : vector<32x128xf32>
    %98 = arith.mulf %97, %5 : vector<32x128xf32>
    %99 = arith.subf %98, %95 : vector<32x128xf32>
    %cst_31 = arith.constant 3.947000e-01 : f32
    %100 = vector.broadcast %cst_31 : f32 to vector<32x128xf32>
    %101 = arith.subf %100, %89 : vector<32x128xf32>
    %102 = arith.mulf %101, %5 : vector<32x128xf32>
    %103 = arith.addf %102, %95 : vector<32x128xf32>
    %cst_32 = arith.constant 3.816000e-01 : f32
    %104 = vector.broadcast %cst_32 : f32 to vector<32x128xf32>
    %105 = arith.subf %89, %104 : vector<32x128xf32>
    %106 = arith.mulf %7, %105 : vector<32x128xf32>
    %107 = arith.subf %103, %106 : vector<32x128xf32>
    %108 = arith.addf %41, %71 : vector<32x128xf32>
    %cst_33 = arith.constant 3.000000e+00 : f32
    %109 = vector.broadcast %cst_33 : f32 to vector<32x128xf32>
    %110 = arith.mulf %109, %108 : vector<32x128xf32>
    %111 = arith.addf %17, %110 : vector<32x128xf32>
    %112 = arith.addf %111, %99 : vector<32x128xf32>
    %cst_34 = arith.constant 4.500000e+02 : f32
    %113 = vector.broadcast %cst_34 : f32 to vector<32x128xf32>
    %114 = arith.mulf %113, %112 : vector<32x128xf32>
    %115 = arith.addf %0, %114 : vector<32x128xf32>
    %116 = arith.addf %49, %79 : vector<32x128xf32>
    %cst_35 = arith.constant 3.000000e+00 : f32
    %117 = vector.broadcast %cst_35 : f32 to vector<32x128xf32>
    %118 = arith.mulf %117, %116 : vector<32x128xf32>
    %119 = arith.addf %25, %118 : vector<32x128xf32>
    %120 = arith.addf %119, %107 : vector<32x128xf32>
    %cst_36 = arith.constant 4.500000e+02 : f32
    %121 = vector.broadcast %cst_36 : f32 to vector<32x128xf32>
    %122 = arith.mulf %121, %120 : vector<32x128xf32>
    %123 = arith.addf %1, %122 : vector<32x128xf32>
    %cst_37 = arith.constant -5.000000e+00 : f32
    %124 = vector.broadcast %cst_37 : f32 to vector<32x128xf32>
    %125 = arith.divf %124, %123 : vector<32x128xf32>
    %126 = math.exp %125 : vector<32x128xf32>
    %cst_38 = arith.constant 0.0833333358 : f32
    %127 = vector.broadcast %cst_38 : f32 to vector<32x128xf32>
    %128 = arith.mulf %127, %126 : vector<32x128xf32>
    %129 = arith.mulf %115, %128 : vector<32x128xf32>
    %cst_39 = arith.constant 1.000000e+00 : f32
    %130 = vector.broadcast %cst_39 : f32 to vector<32x128xf32>
    %131 = arith.subf %130, %115 : vector<32x128xf32>
    %132 = arith.mulf %131, %5 : vector<32x128xf32>
    %133 = arith.subf %132, %129 : vector<32x128xf32>
    %cst_40 = arith.constant 3.947000e-01 : f32
    %134 = vector.broadcast %cst_40 : f32 to vector<32x128xf32>
    %135 = arith.subf %134, %123 : vector<32x128xf32>
    %136 = arith.mulf %135, %5 : vector<32x128xf32>
    %137 = arith.addf %136, %129 : vector<32x128xf32>
    %cst_41 = arith.constant 3.816000e-01 : f32
    %138 = vector.broadcast %cst_41 : f32 to vector<32x128xf32>
    %139 = arith.subf %123, %138 : vector<32x128xf32>
    %140 = arith.mulf %7, %139 : vector<32x128xf32>
    %141 = arith.subf %137, %140 : vector<32x128xf32>
    %cst_42 = arith.constant 6.000000e+02 : f32
    %142 = vector.broadcast %cst_42 : f32 to vector<32x128xf32>
    %143 = arith.mulf %142, %133 : vector<32x128xf32>
    %144 = arith.addf %115, %143 : vector<32x128xf32>
    %cst_43 = arith.constant 6.000000e+02 : f32
    %145 = vector.broadcast %cst_43 : f32 to vector<32x128xf32>
    %146 = arith.mulf %145, %141 : vector<32x128xf32>
    %147 = arith.addf %123, %146 : vector<32x128xf32>
    %cst_44 = arith.constant -5.000000e+00 : f32
    %148 = vector.broadcast %cst_44 : f32 to vector<32x128xf32>
    %149 = arith.divf %148, %147 : vector<32x128xf32>
    %150 = math.exp %149 : vector<32x128xf32>
    %cst_45 = arith.constant 0.0833333358 : f32
    %151 = vector.broadcast %cst_45 : f32 to vector<32x128xf32>
    %152 = arith.mulf %151, %150 : vector<32x128xf32>
    %153 = arith.mulf %144, %152 : vector<32x128xf32>
    %cst_46 = arith.constant 1.000000e+00 : f32
    %154 = vector.broadcast %cst_46 : f32 to vector<32x128xf32>
    %155 = arith.subf %154, %144 : vector<32x128xf32>
    %156 = arith.mulf %155, %5 : vector<32x128xf32>
    %157 = arith.subf %156, %153 : vector<32x128xf32>
    %cst_47 = arith.constant 3.947000e-01 : f32
    %158 = vector.broadcast %cst_47 : f32 to vector<32x128xf32>
    %159 = arith.subf %158, %147 : vector<32x128xf32>
    %160 = arith.mulf %159, %5 : vector<32x128xf32>
    %161 = arith.addf %160, %153 : vector<32x128xf32>
    %cst_48 = arith.constant 3.816000e-01 : f32
    %162 = vector.broadcast %cst_48 : f32 to vector<32x128xf32>
    %163 = arith.subf %147, %162 : vector<32x128xf32>
    %164 = arith.mulf %7, %163 : vector<32x128xf32>
    %165 = arith.subf %161, %164 : vector<32x128xf32>
    %cst_49 = arith.constant 0.333333343 : f32
    %166 = vector.broadcast %cst_49 : f32 to vector<32x128xf32>
    %167 = arith.mulf %166, %133 : vector<32x128xf32>
    %168 = arith.subf %157, %167 : vector<32x128xf32>
    %cst_50 = arith.constant 1.800000e+03 : f32
    %169 = vector.broadcast %cst_50 : f32 to vector<32x128xf32>
    %170 = arith.mulf %169, %168 : vector<32x128xf32>
    %171 = arith.addf %115, %170 : vector<32x128xf32>
    %cst_51 = arith.constant 0.333333343 : f32
    %172 = vector.broadcast %cst_51 : f32 to vector<32x128xf32>
    %173 = arith.mulf %172, %141 : vector<32x128xf32>
    %174 = arith.subf %165, %173 : vector<32x128xf32>
    %cst_52 = arith.constant 1.800000e+03 : f32
    %175 = vector.broadcast %cst_52 : f32 to vector<32x128xf32>
    %176 = arith.mulf %175, %174 : vector<32x128xf32>
    %177 = arith.addf %123, %176 : vector<32x128xf32>
    %cst_53 = arith.constant -5.000000e+00 : f32
    %178 = vector.broadcast %cst_53 : f32 to vector<32x128xf32>
    %179 = arith.divf %178, %177 : vector<32x128xf32>
    %180 = math.exp %179 : vector<32x128xf32>
    %cst_54 = arith.constant 0.0833333358 : f32
    %181 = vector.broadcast %cst_54 : f32 to vector<32x128xf32>
    %182 = arith.mulf %181, %180 : vector<32x128xf32>
    %183 = arith.mulf %171, %182 : vector<32x128xf32>
    %cst_55 = arith.constant 1.000000e+00 : f32
    %184 = vector.broadcast %cst_55 : f32 to vector<32x128xf32>
    %185 = arith.subf %184, %171 : vector<32x128xf32>
    %186 = arith.mulf %185, %5 : vector<32x128xf32>
    %187 = arith.subf %186, %183 : vector<32x128xf32>
    %cst_56 = arith.constant 3.947000e-01 : f32
    %188 = vector.broadcast %cst_56 : f32 to vector<32x128xf32>
    %189 = arith.subf %188, %177 : vector<32x128xf32>
    %190 = arith.mulf %189, %5 : vector<32x128xf32>
    %191 = arith.addf %190, %183 : vector<32x128xf32>
    %cst_57 = arith.constant 3.816000e-01 : f32
    %192 = vector.broadcast %cst_57 : f32 to vector<32x128xf32>
    %193 = arith.subf %177, %192 : vector<32x128xf32>
    %194 = arith.mulf %7, %193 : vector<32x128xf32>
    %195 = arith.subf %191, %194 : vector<32x128xf32>
    %196 = arith.subf %133, %157 : vector<32x128xf32>
    %197 = arith.addf %196, %187 : vector<32x128xf32>
    %cst_58 = arith.constant 1.800000e+03 : f32
    %198 = vector.broadcast %cst_58 : f32 to vector<32x128xf32>
    %199 = arith.mulf %198, %197 : vector<32x128xf32>
    %200 = arith.addf %115, %199 : vector<32x128xf32>
    %201 = arith.subf %141, %165 : vector<32x128xf32>
    %202 = arith.addf %201, %195 : vector<32x128xf32>
    %cst_59 = arith.constant 1.800000e+03 : f32
    %203 = vector.broadcast %cst_59 : f32 to vector<32x128xf32>
    %204 = arith.mulf %203, %202 : vector<32x128xf32>
    %205 = arith.addf %123, %204 : vector<32x128xf32>
    %cst_60 = arith.constant -5.000000e+00 : f32
    %206 = vector.broadcast %cst_60 : f32 to vector<32x128xf32>
    %207 = arith.divf %206, %205 : vector<32x128xf32>
    %208 = math.exp %207 : vector<32x128xf32>
    %cst_61 = arith.constant 0.0833333358 : f32
    %209 = vector.broadcast %cst_61 : f32 to vector<32x128xf32>
    %210 = arith.mulf %209, %208 : vector<32x128xf32>
    %211 = arith.mulf %200, %210 : vector<32x128xf32>
    %cst_62 = arith.constant 1.000000e+00 : f32
    %212 = vector.broadcast %cst_62 : f32 to vector<32x128xf32>
    %213 = arith.subf %212, %200 : vector<32x128xf32>
    %214 = arith.mulf %213, %5 : vector<32x128xf32>
    %215 = arith.subf %214, %211 : vector<32x128xf32>
    %cst_63 = arith.constant 3.947000e-01 : f32
    %216 = vector.broadcast %cst_63 : f32 to vector<32x128xf32>
    %217 = arith.subf %216, %205 : vector<32x128xf32>
    %218 = arith.mulf %217, %5 : vector<32x128xf32>
    %219 = arith.addf %218, %211 : vector<32x128xf32>
    %cst_64 = arith.constant 3.816000e-01 : f32
    %220 = vector.broadcast %cst_64 : f32 to vector<32x128xf32>
    %221 = arith.subf %205, %220 : vector<32x128xf32>
    %222 = arith.mulf %7, %221 : vector<32x128xf32>
    %223 = arith.subf %219, %222 : vector<32x128xf32>
    %224 = arith.addf %157, %187 : vector<32x128xf32>
    %cst_65 = arith.constant 3.000000e+00 : f32
    %225 = vector.broadcast %cst_65 : f32 to vector<32x128xf32>
    %226 = arith.mulf %225, %224 : vector<32x128xf32>
    %227 = arith.addf %133, %226 : vector<32x128xf32>
    %228 = arith.addf %227, %215 : vector<32x128xf32>
    %cst_66 = arith.constant 2.250000e+02 : f32
    %229 = vector.broadcast %cst_66 : f32 to vector<32x128xf32>
    %230 = arith.mulf %229, %228 : vector<32x128xf32>
    %231 = arith.addf %115, %230 : vector<32x128xf32>
    %232 = arith.addf %165, %195 : vector<32x128xf32>
    %cst_67 = arith.constant 3.000000e+00 : f32
    %233 = vector.broadcast %cst_67 : f32 to vector<32x128xf32>
    %234 = arith.mulf %233, %232 : vector<32x128xf32>
    %235 = arith.addf %141, %234 : vector<32x128xf32>
    %236 = arith.addf %235, %223 : vector<32x128xf32>
    %cst_68 = arith.constant 2.250000e+02 : f32
    %237 = vector.broadcast %cst_68 : f32 to vector<32x128xf32>
    %238 = arith.mulf %237, %236 : vector<32x128xf32>
    %239 = arith.addf %123, %238 : vector<32x128xf32>
    %240 = tpu.concatenate %231, %239 in 0 : vector<32x128xf32>, vector<32x128xf32> -> vector<64x128xf32>
    %c0_69 = arith.constant 0 : index
    %c0_70 = arith.constant 0 : index
    %241 = vector.load %arg2[%c0_69, %c0_70] : memref<64x128xf32, #tpu.memory_space<vmem>>, vector<64x128xf32>
    tpu.vector_store %arg2[%c0_69, %c0_70], %240 {strides = array<i32>} : memref<64x128xf32, #tpu.memory_space<vmem>>, vector<64x128xf32>,
    return
  }
  func.func @transform_0(%arg0: i32) -> (i32, i32) {
    %c0_i32 = arith.constant 0 : i32
    %c0_i32_0 = arith.constant 0 : i32
    return %arg0, %c0_i32 : i32, i32
  }
  func.func @transform_1(%arg0: i32) -> (i32, i32) {
    %c0_i32 = arith.constant 0 : i32
    %c0_i32_0 = arith.constant 0 : i32
    return %arg0, %c0_i32 : i32, i32
  }
}

</mosaic_0001>

<llo_original>
// kernel: fwd.1
$region0: #{fwd.1}
  #allocation0 [shape = 'u32[]', space=smem, size = 0x4, offset = 0x4, fixed_abs, tag = 'smem constant byte address 0x4 - core index']
  #allocation1 [shape = 'u32[144,128]{1,0:T(1,128)}', space=vmem, size = 0x12000, scoped, tag = 'internal scratch']
  %s0 = inlined_call_operand.vmem [shape: f32[128,128], index: 0, kind: input, shape index: {}]
  %s1 = inlined_call_operand.vmem [shape: f32[64,128], index: 1, kind: output, shape index: {}]
  %s2 = sld [smem:[#allocation0]]
  $region14: #{fwd.1} parent=0
    _
  %s4 = ssub.s32 1, %s2
  %s5 = scalar_select 0, %s4, %s2
  // Predicated region
  $region2: #{fwd.1} parent=0 // pred_check
    _
  $region3: #{fwd.1} parent=0 // pred_check_branch
    %7 = sbr.rel (0) target = $region5
  $region4: #{fwd.1} parent=0 // pred_region
    _
  $region5: #{fwd.1} parent=0 // pred_fallthru
    _
  %v8 = vld [vmem:[%s0] sm:$0xff]
  %v9 = vld [vmem:[%s0 + $0x8] sm:$0xff]
  %v10 = vld [vmem:[%s0 + $0x10] sm:$0xff]
  %v11 = vld [vmem:[%s0 + $0x18] sm:$0xff]
  %v12 = vld [vmem:[%s0 + $0x20] sm:$0xff]
  %v13 = vld [vmem:[%s0 + $0x28] sm:$0xff]
  %v14 = vld [vmem:[%s0 + $0x30] sm:$0xff]
  %v15 = vld [vmem:[%s0 + $0x38] sm:$0xff]
  %v16 = vld [vmem:[%s0 + $0x40] sm:$0xff]
  %v17 = vld [vmem:[%s0 + $0x48] sm:$0xff]
  %v18 = vld [vmem:[%s0 + $0x50] sm:$0xff]
  %v19 = vld [vmem:[%s0 + $0x58] sm:$0xff]
  %v20 = vld [vmem:[%s0 + $0x60] sm:$0xff]
  %v21 = vld [vmem:[%s0 + $0x68] sm:$0xff]
  %v22 = vld [vmem:[%s0 + $0x70] sm:$0xff]
  %v23 = vld [vmem:[%s0 + $0x78] sm:$0xff]
  %v24 = vmul.f32 %v16, 0.05
  %v25 = vmul.f32 %v17, 0.05
  %v26 = vmul.f32 %v18, 0.05
  %v27 = vmul.f32 %v19, 0.05
  %v28 = vmul.f32 %v20, 0.000195
  %v29 = vmul.f32 %v21, 0.000195
  %v30 = vmul.f32 %v22, 0.000195
  %v31 = vmul.f32 %v23, 0.000195
  %v32 = vrcp.pop %v12
  %v33 = vmul.f32 -5.0, %v32
  %v34 = vrcp.pop %v13
  %v35 = vmul.f32 -5.0, %v34
  %v36 = vrcp.pop %v14
  %v37 = vmul.f32 -5.0, %v36
  %v38 = vrcp.pop %v15
  %v39 = vmul.f32 -5.0, %v38
  %v40 = vmul.f32 %v33, 1.442695
  %v41 = vpow.pop %v40
  %v42 = vmul.f32 %v35, 1.442695
  %v43 = vpow.pop %v42
  %v44 = vmul.f32 %v37, 1.442695
  %v45 = vpow.pop %v44
  %v46 = vmul.f32 %v39, 1.442695
  %v47 = vpow.pop %v46
  %v48 = vmul.f32 %v41, 0.083333336
  %v49 = vmul.f32 %v43, 0.083333336
  %v50 = vmul.f32 %v45, 0.083333336
  %v51 = vmul.f32 %v47, 0.083333336
  %v52 = vmul.f32 %v8, %v48
  %v53 = vmul.f32 %v9, %v49
  %v54 = vmul.f32 %v10, %v50
  %v55 = vmul.f32 %v11, %v51
  %v56 = vsub.f32 1.0, %v8
  %v57 = vsub.f32 1.0, %v9
  %v58 = vsub.f32 1.0, %v10
  %v59 = vsub.f32 1.0, %v11
  %v60 = vmul.f32 %v56, %v24
  %v61 = vmul.f32 %v57, %v25
  %v62 = vmul.f32 %v58, %v26
  %v63 = vmul.f32 %v59, %v27
  %v64 = vsub.f32 %v60, %v52
  %v65 = vsub.f32 %v61, %v53
  %v66 = vsub.f32 %v62, %v54
  %v67 = vsub.f32 %v63, %v55
  %v68 = vsub.f32 0.3947, %v12
  %v69 = vsub.f32 0.3947, %v13
  %v70 = vsub.f32 0.3947, %v14
  %v71 = vsub.f32 0.3947, %v15
  %v72 = vmul.f32 %v68, %v24
  %v73 = vmul.f32 %v69, %v25
  %v74 = vmul.f32 %v70, %v26
  %v75 = vmul.f32 %v71, %v27
  %v76 = vadd.f32 %v72, %v52
  %v77 = vadd.f32 %v73, %v53
  %v78 = vadd.f32 %v74, %v54
  %v79 = vadd.f32 %v75, %v55
  %v80 = vsub.f32 %v12, 0.3816
  %v81 = vsub.f32 %v13, 0.3816
  %v82 = vsub.f32 %v14, 0.3816
  %v83 = vsub.f32 %v15, 0.3816
  %v84 = vmul.f32 %v28, %v80
  %v85 = vmul.f32 %v29, %v81
  %v86 = vmul.f32 %v30, %v82
  %v87 = vmul.f32 %v31, %v83
  %v88 = vsub.f32 %v76, %v84
  %v89 = vsub.f32 %v77, %v85
  %v90 = vsub.f32 %v78, %v86
  %v91 = vsub.f32 %v79, %v87
  %v92 = vmul.f32 %v64, 1200.0
  %v93 = vmul.f32 %v65, 1200.0
  %v94 = vmul.f32 %v66, 1200.0
  %v95 = vmul.f32 %v67, 1200.0
  %v96 = vadd.f32 %v8, %v92
  %v97 = vadd.f32 %v9, %v93
  %v98 = vadd.f32 %v10, %v94
  %v99 = vadd.f32 %v11, %v95
  %v100 = vmul.f32 %v88, 1200.0
  %v101 = vmul.f32 %v89, 1200.0
  %v102 = vmul.f32 %v90, 1200.0
  %v103 = vmul.f32 %v91, 1200.0
  %v104 = vadd.f32 %v12, %v100
  %v105 = vadd.f32 %v13, %v101
  %v106 = vadd.f32 %v14, %v102
  %v107 = vadd.f32 %v15, %v103
  %v108 = vrcp.pop %v104
  %v109 = vmul.f32 -5.0, %v108
  %v110 = vrcp.pop %v105
  %v111 = vmul.f32 -5.0, %v110
  %v112 = vrcp.pop %v106
  %v113 = vmul.f32 -5.0, %v112
  %v114 = vrcp.pop %v107
  %v115 = vmul.f32 -5.0, %v114
  %v116 = vmul.f32 %v109, 1.442695
  %v117 = vpow.pop %v116
  %v118 = vmul.f32 %v111, 1.442695
  %v119 = vpow.pop %v118
  %v120 = vmul.f32 %v113, 1.442695
  %v121 = vpow.pop %v120
  %v122 = vmul.f32 %v115, 1.442695
  %v123 = vpow.pop %v122
  %v124 = vmul.f32 %v117, 0.083333336
  %v125 = vmul.f32 %v119, 0.083333336
  %v126 = vmul.f32 %v121, 0.083333336
  %v127 = vmul.f32 %v123, 0.083333336
  %v128 = vmul.f32 %v96, %v124
  %v129 = vmul.f32 %v97, %v125
  %v130 = vmul.f32 %v98, %v126
  %v131 = vmul.f32 %v99, %v127
  %v132 = vsub.f32 1.0, %v96
  %v133 = vsub.f32 1.0, %v97
  %v134 = vsub.f32 1.0, %v98
  %v135 = vsub.f32 1.0, %v99
  %v136 = vmul.f32 %v132, %v24
  %v137 = vmul.f32 %v133, %v25
  %v138 = vmul.f32 %v134, %v26
  %v139 = vmul.f32 %v135, %v27
  %v140 = vsub.f32 %v136, %v128
  %v141 = vsub.f32 %v137, %v129
  %v142 = vsub.f32 %v138, %v130
  %v143 = vsub.f32 %v139, %v131
  %v144 = vsub.f32 0.3947, %v104
  %v145 = vsub.f32 0.3947, %v105
  %v146 = vsub.f32 0.3947, %v106
  %v147 = vsub.f32 0.3947, %v107
  %v148 = vmul.f32 %v144, %v24
  %v149 = vmul.f32 %v145, %v25
  %v150 = vmul.f32 %v146, %v26
  %v151 = vmul.f32 %v147, %v27
  %v152 = vadd.f32 %v148, %v128
  %v153 = vadd.f32 %v149, %v129
  %v154 = vadd.f32 %v150, %v130
  %v155 = vadd.f32 %v151, %v131
  %v156 = vsub.f32 %v104, 0.3816
  %v157 = vsub.f32 %v105, 0.3816
  %v158 = vsub.f32 %v106, 0.3816
  %v159 = vsub.f32 %v107, 0.3816
  %v160 = vmul.f32 %v28, %v156
  %v161 = vmul.f32 %v29, %v157
  %v162 = vmul.f32 %v30, %v158
  %v163 = vmul.f32 %v31, %v159
  %v164 = vsub.f32 %v152, %v160
  %v165 = vsub.f32 %v153, %v161
  %v166 = vsub.f32 %v154, %v162
  %v167 = vsub.f32 %v155, %v163
  %v168 = vmul.f32 %v64, 0.33333334
  %v169 = vmul.f32 %v65, 0.33333334
  %v170 = vmul.f32 %v66, 0.33333334
  %v171 = vmul.f32 %v67, 0.33333334
  %v172 = vsub.f32 %v140, %v168
  %v173 = vsub.f32 %v141, %v169
  %v174 = vsub.f32 %v142, %v170
  %v175 = vsub.f32 %v143, %v171
  %v176 = vmul.f32 %v172, 3600.0
  %v177 = vmul.f32 %v173, 3600.0
  %v178 = vmul.f32 %v174, 3600.0
  %v179 = vmul.f32 %v175, 3600.0
  %v180 = vadd.f32 %v8, %v176
  %v181 = vadd.f32 %v9, %v177
  %v182 = vadd.f32 %v10, %v178
  %v183 = vadd.f32 %v11, %v179
  %v184 = vmul.f32 %v88, 0.33333334
  %v185 = vmul.f32 %v89, 0.33333334
  %v186 = vmul.f32 %v90, 0.33333334
  %v187 = vmul.f32 %v91, 0.33333334
  %v188 = vsub.f32 %v164, %v184
  %v189 = vsub.f32 %v165, %v185
  %v190 = vsub.f32 %v166, %v186
  %v191 = vsub.f32 %v167, %v187
  %v192 = vmul.f32 %v188, 3600.0
  %v193 = vmul.f32 %v189, 3600.0
  %v194 = vmul.f32 %v190, 3600.0
  %v195 = vmul.f32 %v191, 3600.0
  %v196 = vadd.f32 %v12, %v192
  %v197 = vadd.f32 %v13, %v193
  %v198 = vadd.f32 %v14, %v194
  %v199 = vadd.f32 %v15, %v195
  %v200 = vrcp.pop %v196
  %v201 = vmul.f32 -5.0, %v200
  %v202 = vrcp.pop %v197
  %v203 = vmul.f32 -5.0, %v202
  %v204 = vrcp.pop %v198
  %v205 = vmul.f32 -5.0, %v204
  %v206 = vrcp.pop %v199
  %v207 = vmul.f32 -5.0, %v206
  %v208 = vmul.f32 %v201, 1.442695
  %v209 = vpow.pop %v208
  %v210 = vmul.f32 %v203, 1.442695
  %v211 = vpow.pop %v210
  %v212 = vmul.f32 %v205, 1.442695
  %v213 = vpow.pop %v212
  %v214 = vmul.f32 %v207, 1.442695
  %v215 = vpow.pop %v214
  %v216 = vmul.f32 %v209, 0.083333336
  %v217 = vmul.f32 %v211, 0.083333336
  %v218 = vmul.f32 %v213, 0.083333336
  %v219 = vmul.f32 %v215, 0.083333336
  %v220 = vmul.f32 %v180, %v216
  %v221 = vmul.f32 %v181, %v217
  %v222 = vmul.f32 %v182, %v218
  %v223 = vmul.f32 %v183, %v219
  %v224 = vsub.f32 1.0, %v180
  %v225 = vsub.f32 1.0, %v181
  %v226 = vsub.f32 1.0, %v182
  %v227 = vsub.f32 1.0, %v183
  %v228 = vmul.f32 %v224, %v24
  %v229 = vmul.f32 %v225, %v25
  %v230 = vmul.f32 %v226, %v26
  %v231 = vmul.f32 %v227, %v27
  %v232 = vsub.f32 %v228, %v220
  %v233 = vsub.f32 %v229, %v221
  %v234 = vsub.f32 %v230, %v222
  %v235 = vsub.f32 %v231, %v223
  %v236 = vsub.f32 0.3947, %v196
  %v237 = vsub.f32 0.3947, %v197
  %v238 = vsub.f32 0.3947, %v198
  %v239 = vsub.f32 0.3947, %v199
  %v240 = vmul.f32 %v236, %v24
  %v241 = vmul.f32 %v237, %v25
  %v242 = vmul.f32 %v238, %v26
  %v243 = vmul.f32 %v239, %v27
  %v244 = vadd.f32 %v240, %v220
  %v245 = vadd.f32 %v241, %v221
  %v246 = vadd.f32 %v242, %v222
  %v247 = vadd.f32 %v243, %v223
  %v248 = vsub.f32 %v196, 0.3816
  %v249 = vsub.f32 %v197, 0.3816
  %v250 = vsub.f32 %v198, 0.3816
  %v251 = vsub.f32 %v199, 0.3816
  %v252 = vmul.f32 %v28, %v248
  %v253 = vmul.f32 %v29, %v249
  %v254 = vmul.f32 %v30, %v250
  %v255 = vmul.f32 %v31, %v251
  %v256 = vsub.f32 %v244, %v252
  %v257 = vsub.f32 %v245, %v253
  %v258 = vsub.f32 %v246, %v254
  %v259 = vsub.f32 %v247, %v255
  %v260 = vsub.f32 %v64, %v140
  %v261 = vsub.f32 %v65, %v141
  %v262 = vsub.f32 %v66, %v142
  %v263 = vsub.f32 %v67, %v143
  %v264 = vadd.f32 %v260, %v232
  %v265 = vadd.f32 %v261, %v233
  %v266 = vadd.f32 %v262, %v234
  %v267 = vadd.f32 %v263, %v235
  %v268 = vmul.f32 %v264, 3600.0
  %v269 = vmul.f32 %v265, 3600.0
  %v270 = vmul.f32 %v266, 3600.0
  %v271 = vmul.f32 %v267, 3600.0
  %v272 = vadd.f32 %v8, %v268
  %v273 = vadd.f32 %v9, %v269
  %v274 = vadd.f32 %v10, %v270
  %v275 = vadd.f32 %v11, %v271
  %v276 = vsub.f32 %v88, %v164
  %v277 = vsub.f32 %v89, %v165
  %v278 = vsub.f32 %v90, %v166
  %v279 = vsub.f32 %v91, %v167
  %v280 = vadd.f32 %v276, %v256
  %v281 = vadd.f32 %v277, %v257
  %v282 = vadd.f32 %v278, %v258
  %v283 = vadd.f32 %v279, %v259
  %v284 = vmul.f32 %v280, 3600.0
  %v285 = vmul.f32 %v281, 3600.0
  %v286 = vmul.f32 %v282, 3600.0
  %v287 = vmul.f32 %v283, 3600.0
  %v288 = vadd.f32 %v12, %v284
  %v289 = vadd.f32 %v13, %v285
  %v290 = vadd.f32 %v14, %v286
  %v291 = vadd.f32 %v15, %v287
  %v292 = vrcp.pop %v288
  %v293 = vmul.f32 -5.0, %v292
  %v294 = vrcp.pop %v289
  %v295 = vmul.f32 -5.0, %v294
  %v296 = vrcp.pop %v290
  %v297 = vmul.f32 -5.0, %v296
  %v298 = vrcp.pop %v291
  %v299 = vmul.f32 -5.0, %v298
  %v300 = vmul.f32 %v293, 1.442695
  %v301 = vpow.pop %v300
  %v302 = vmul.f32 %v295, 1.442695
  %v303 = vpow.pop %v302
  %v304 = vmul.f32 %v297, 1.442695
  %v305 = vpow.pop %v304
  %v306 = vmul.f32 %v299, 1.442695
  %v307 = vpow.pop %v306
  %v308 = vmul.f32 %v301, 0.083333336
  %v309 = vmul.f32 %v303, 0.083333336
  %v310 = vmul.f32 %v305, 0.083333336
  %v311 = vmul.f32 %v307, 0.083333336
  %v312 = vmul.f32 %v272, %v308
  %v313 = vmul.f32 %v273, %v309
  %v314 = vmul.f32 %v274, %v310
  %v315 = vmul.f32 %v275, %v311
  %v316 = vsub.f32 1.0, %v272
  %v317 = vsub.f32 1.0, %v273
  %v318 = vsub.f32 1.0, %v274
  %v319 = vsub.f32 1.0, %v275
  %v320 = vmul.f32 %v316, %v24
  %v321 = vmul.f32 %v317, %v25
  %v322 = vmul.f32 %v318, %v26
  %v323 = vmul.f32 %v319, %v27
  %v324 = vsub.f32 %v320, %v312
  %v325 = vsub.f32 %v321, %v313
  %v326 = vsub.f32 %v322, %v314
  %v327 = vsub.f32 %v323, %v315
  %v328 = vsub.f32 0.3947, %v288
  %v329 = vsub.f32 0.3947, %v289
  %v330 = vsub.f32 0.3947, %v290
  %v331 = vsub.f32 0.3947, %v291
  %v332 = vmul.f32 %v328, %v24
  %v333 = vmul.f32 %v329, %v25
  %v334 = vmul.f32 %v330, %v26
  %v335 = vmul.f32 %v331, %v27
  %v336 = vadd.f32 %v332, %v312
  %v337 = vadd.f32 %v333, %v313
  %v338 = vadd.f32 %v334, %v314
  %v339 = vadd.f32 %v335, %v315
  %v340 = vsub.f32 %v288, 0.3816
  %v341 = vsub.f32 %v289, 0.3816
  %v342 = vsub.f32 %v290, 0.3816
  %v343 = vsub.f32 %v291, 0.3816
  %v344 = vmul.f32 %v28, %v340
  %v345 = vmul.f32 %v29, %v341
  %v346 = vmul.f32 %v30, %v342
  %v347 = vmul.f32 %v31, %v343
  %v348 = vsub.f32 %v336, %v344
  %v349 = vsub.f32 %v337, %v345
  %v350 = vsub.f32 %v338, %v346
  %v351 = vsub.f32 %v339, %v347
  %v352 = vadd.f32 %v140, %v232
  %v353 = vadd.f32 %v141, %v233
  %v354 = vadd.f32 %v142, %v234
  %v355 = vadd.f32 %v143, %v235
  %v356 = vmul.f32 %v352, 3.0
  %v357 = vmul.f32 %v353, 3.0
  %v358 = vmul.f32 %v354, 3.0
  %v359 = vmul.f32 %v355, 3.0
  %v360 = vadd.f32 %v64, %v356
  %v361 = vadd.f32 %v65, %v357
  %v362 = vadd.f32 %v66, %v358
  %v363 = vadd.f32 %v67, %v359
  %v364 = vadd.f32 %v360, %v324
  %v365 = vadd.f32 %v361, %v325
  %v366 = vadd.f32 %v362, %v326
  %v367 = vadd.f32 %v363, %v327
  %v368 = vmul.f32 %v364, 450.0
  %v369 = vmul.f32 %v365, 450.0
  %v370 = vmul.f32 %v366, 450.0
  %v371 = vmul.f32 %v367, 450.0
  %v372 = vadd.f32 %v8, %v368
  %v373 = vadd.f32 %v9, %v369
  %v374 = vadd.f32 %v10, %v370
  %v375 = vadd.f32 %v11, %v371
  %v376 = vadd.f32 %v164, %v256
  %v377 = vadd.f32 %v165, %v257
  %v378 = vadd.f32 %v166, %v258
  %v379 = vadd.f32 %v167, %v259
  %v380 = vmul.f32 %v376, 3.0
  %v381 = vmul.f32 %v377, 3.0
  %v382 = vmul.f32 %v378, 3.0
  %v383 = vmul.f32 %v379, 3.0
  %v384 = vadd.f32 %v88, %v380
  %v385 = vadd.f32 %v89, %v381
  %v386 = vadd.f32 %v90, %v382
  %v387 = vadd.f32 %v91, %v383
  %v388 = vadd.f32 %v384, %v348
  %v389 = vadd.f32 %v385, %v349
  %v390 = vadd.f32 %v386, %v350
  %v391 = vadd.f32 %v387, %v351
  %v392 = vmul.f32 %v388, 450.0
  %v393 = vmul.f32 %v389, 450.0
  %v394 = vmul.f32 %v390, 450.0
  %v395 = vmul.f32 %v391, 450.0
  %v396 = vadd.f32 %v12, %v392
  %v397 = vadd.f32 %v13, %v393
  %v398 = vadd.f32 %v14, %v394
  %v399 = vadd.f32 %v15, %v395
  %v400 = vrcp.pop %v396
  %v401 = vmul.f32 -5.0, %v400
  %v402 = vrcp.pop %v397
  %v403 = vmul.f32 -5.0, %v402
  %v404 = vrcp.pop %v398
  %v405 = vmul.f32 -5.0, %v404
  %v406 = vrcp.pop %v399
  %v407 = vmul.f32 -5.0, %v406
  %v408 = vmul.f32 %v401, 1.442695
  %v409 = vpow.pop %v408
  %v410 = vmul.f32 %v403, 1.442695
  %v411 = vpow.pop %v410
  %v412 = vmul.f32 %v405, 1.442695
  %v413 = vpow.pop %v412
  %v414 = vmul.f32 %v407, 1.442695
  %v415 = vpow.pop %v414
  %v416 = vmul.f32 %v409, 0.083333336
  %v417 = vmul.f32 %v411, 0.083333336
  %v418 = vmul.f32 %v413, 0.083333336
  %v419 = vmul.f32 %v415, 0.083333336
  %v420 = vmul.f32 %v372, %v416
  %v421 = vmul.f32 %v373, %v417
  %v422 = vmul.f32 %v374, %v418
  %v423 = vmul.f32 %v375, %v419
  %v424 = vsub.f32 1.0, %v372
  %v425 = vsub.f32 1.0, %v373
  %v426 = vsub.f32 1.0, %v374
  %v427 = vsub.f32 1.0, %v375
  %v428 = vmul.f32 %v424, %v24
  %v429 = vmul.f32 %v425, %v25
  %v430 = vmul.f32 %v426, %v26
  %v431 = vmul.f32 %v427, %v27
  %v432 = vsub.f32 %v428, %v420
  %v433 = vsub.f32 %v429, %v421
  %v434 = vsub.f32 %v430, %v422
  %v435 = vsub.f32 %v431, %v423
  %v436 = vsub.f32 0.3947, %v396
  %v437 = vsub.f32 0.3947, %v397
  %v438 = vsub.f32 0.3947, %v398
  %v439 = vsub.f32 0.3947, %v399
  %v440 = vmul.f32 %v436, %v24
  %v441 = vmul.f32 %v437, %v25
  %v442 = vmul.f32 %v438, %v26
  %v443 = vmul.f32 %v439, %v27
  %v444 = vadd.f32 %v440, %v420
  %v445 = vadd.f32 %v441, %v421
  %v446 = vadd.f32 %v442, %v422
  %v447 = vadd.f32 %v443, %v423
  %v448 = vsub.f32 %v396, 0.3816
  %v449 = vsub.f32 %v397, 0.3816
  %v450 = vsub.f32 %v398, 0.3816
  %v451 = vsub.f32 %v399, 0.3816
  %v452 = vmul.f32 %v28, %v448
  %v453 = vmul.f32 %v29, %v449
  %v454 = vmul.f32 %v30, %v450
  %v455 = vmul.f32 %v31, %v451
  %v456 = vsub.f32 %v444, %v452
  %v457 = vsub.f32 %v445, %v453
  %v458 = vsub.f32 %v446, %v454
  %v459 = vsub.f32 %v447, %v455
  %v460 = vmul.f32 %v432, 600.0
  %v461 = vmul.f32 %v433, 600.0
  %v462 = vmul.f32 %v434, 600.0
  %v463 = vmul.f32 %v435, 600.0
  %v464 = vadd.f32 %v372, %v460
  %v465 = vadd.f32 %v373, %v461
  %v466 = vadd.f32 %v374, %v462
  %v467 = vadd.f32 %v375, %v463
  %v468 = vmul.f32 %v456, 600.0
  %v469 = vmul.f32 %v457, 600.0
  %v470 = vmul.f32 %v458, 600.0
  %v471 = vmul.f32 %v459, 600.0
  %v472 = vadd.f32 %v396, %v468
  %v473 = vadd.f32 %v397, %v469
  %v474 = vadd.f32 %v398, %v470
  %v475 = vadd.f32 %v399, %v471
  %v476 = vrcp.pop %v472
  %v477 = vmul.f32 -5.0, %v476
  %v478 = vrcp.pop %v473
  %v479 = vmul.f32 -5.0, %v478
  %v480 = vrcp.pop %v474
  %v481 = vmul.f32 -5.0, %v480
  %v482 = vrcp.pop %v475
  %v483 = vmul.f32 -5.0, %v482
  %v484 = vmul.f32 %v477, 1.442695
  %v485 = vpow.pop %v484
  %v486 = vmul.f32 %v479, 1.442695
  %v487 = vpow.pop %v486
  %v488 = vmul.f32 %v481, 1.442695
  %v489 = vpow.pop %v488
  %v490 = vmul.f32 %v483, 1.442695
  %v491 = vpow.pop %v490
  %v492 = vmul.f32 %v485, 0.083333336
  %v493 = vmul.f32 %v487, 0.083333336
  %v494 = vmul.f32 %v489, 0.083333336
  %v495 = vmul.f32 %v491, 0.083333336
  %v496 = vmul.f32 %v464, %v492
  %v497 = vmul.f32 %v465, %v493
  %v498 = vmul.f32 %v466, %v494
  %v499 = vmul.f32 %v467, %v495
  %v500 = vsub.f32 1.0, %v464
  %v501 = vsub.f32 1.0, %v465
  %v502 = vsub.f32 1.0, %v466
  %v503 = vsub.f32 1.0, %v467
  %v504 = vmul.f32 %v500, %v24
  %v505 = vmul.f32 %v501, %v25
  %v506 = vmul.f32 %v502, %v26
  %v507 = vmul.f32 %v503, %v27
  %v508 = vsub.f32 %v504, %v496
  %v509 = vsub.f32 %v505, %v497
  %v510 = vsub.f32 %v506, %v498
  %v511 = vsub.f32 %v507, %v499
  %v512 = vsub.f32 0.3947, %v472
  %v513 = vsub.f32 0.3947, %v473
  %v514 = vsub.f32 0.3947, %v474
  %v515 = vsub.f32 0.3947, %v475
  %v516 = vmul.f32 %v512, %v24
  %v517 = vmul.f32 %v513, %v25
  %v518 = vmul.f32 %v514, %v26
  %v519 = vmul.f32 %v515, %v27
  %v520 = vadd.f32 %v516, %v496
  %v521 = vadd.f32 %v517, %v497
  %v522 = vadd.f32 %v518, %v498
  %v523 = vadd.f32 %v519, %v499
  %v524 = vsub.f32 %v472, 0.3816
  %v525 = vsub.f32 %v473, 0.3816
  %v526 = vsub.f32 %v474, 0.3816
  %v527 = vsub.f32 %v475, 0.3816
  %v528 = vmul.f32 %v28, %v524
  %v529 = vmul.f32 %v29, %v525
  %v530 = vmul.f32 %v30, %v526
  %v531 = vmul.f32 %v31, %v527
  %v532 = vsub.f32 %v520, %v528
  %v533 = vsub.f32 %v521, %v529
  %v534 = vsub.f32 %v522, %v530
  %v535 = vsub.f32 %v523, %v531
  %v536 = vmul.f32 %v432, 0.33333334
  %v537 = vmul.f32 %v433, 0.33333334
  %v538 = vmul.f32 %v434, 0.33333334
  %v539 = vmul.f32 %v435, 0.33333334
  %v540 = vsub.f32 %v508, %v536
  %v541 = vsub.f32 %v509, %v537
  %v542 = vsub.f32 %v510, %v538
  %v543 = vsub.f32 %v511, %v539
  %v544 = vmul.f32 %v540, 1800.0
  %v545 = vmul.f32 %v541, 1800.0
  %v546 = vmul.f32 %v542, 1800.0
  %v547 = vmul.f32 %v543, 1800.0
  %v548 = vadd.f32 %v372, %v544
  %v549 = vadd.f32 %v373, %v545
  %v550 = vadd.f32 %v374, %v546
  %v551 = vadd.f32 %v375, %v547
  %v552 = vmul.f32 %v456, 0.33333334
  %v553 = vmul.f32 %v457, 0.33333334
  %v554 = vmul.f32 %v458, 0.33333334
  %v555 = vmul.f32 %v459, 0.33333334
  %v556 = vsub.f32 %v532, %v552
  %v557 = vsub.f32 %v533, %v553
  %v558 = vsub.f32 %v534, %v554
  %v559 = vsub.f32 %v535, %v555
  %v560 = vmul.f32 %v556, 1800.0
  %v561 = vmul.f32 %v557, 1800.0
  %v562 = vmul.f32 %v558, 1800.0
  %v563 = vmul.f32 %v559, 1800.0
  %v564 = vadd.f32 %v396, %v560
  %v565 = vadd.f32 %v397, %v561
  %v566 = vadd.f32 %v398, %v562
  %v567 = vadd.f32 %v399, %v563
  %v568 = vrcp.pop %v564
  %v569 = vmul.f32 -5.0, %v568
  %v570 = vrcp.pop %v565
  %v571 = vmul.f32 -5.0, %v570
  %v572 = vrcp.pop %v566
  %v573 = vmul.f32 -5.0, %v572
  %v574 = vrcp.pop %v567
  %v575 = vmul.f32 -5.0, %v574
  %v576 = vmul.f32 %v569, 1.442695
  %v577 = vpow.pop %v576
  %v578 = vmul.f32 %v571, 1.442695
  %v579 = vpow.pop %v578
  %v580 = vmul.f32 %v573, 1.442695
  %v581 = vpow.pop %v580
  %v582 = vmul.f32 %v575, 1.442695
  %v583 = vpow.pop %v582
  %v584 = vmul.f32 %v577, 0.083333336
  %v585 = vmul.f32 %v579, 0.083333336
  %v586 = vmul.f32 %v581, 0.083333336
  %v587 = vmul.f32 %v583, 0.083333336
  %v588 = vmul.f32 %v548, %v584
  %v589 = vmul.f32 %v549, %v585
  %v590 = vmul.f32 %v550, %v586
  %v591 = vmul.f32 %v551, %v587
  %v592 = vsub.f32 1.0, %v548
  %v593 = vsub.f32 1.0, %v549
  %v594 = vsub.f32 1.0, %v550
  %v595 = vsub.f32 1.0, %v551
  %v596 = vmul.f32 %v592, %v24
  %v597 = vmul.f32 %v593, %v25
  %v598 = vmul.f32 %v594, %v26
  %v599 = vmul.f32 %v595, %v27
  %v600 = vsub.f32 %v596, %v588
  %v601 = vsub.f32 %v597, %v589
  %v602 = vsub.f32 %v598, %v590
  %v603 = vsub.f32 %v599, %v591
  %v604 = vsub.f32 0.3947, %v564
  %v605 = vsub.f32 0.3947, %v565
  %v606 = vsub.f32 0.3947, %v566
  %v607 = vsub.f32 0.3947, %v567
  %v608 = vmul.f32 %v604, %v24
  %v609 = vmul.f32 %v605, %v25
  %v610 = vmul.f32 %v606, %v26
  %v611 = vmul.f32 %v607, %v27
  %v612 = vadd.f32 %v608, %v588
  %v613 = vadd.f32 %v609, %v589
  %v614 = vadd.f32 %v610, %v590
  %v615 = vadd.f32 %v611, %v591
  %v616 = vsub.f32 %v564, 0.3816
  %v617 = vsub.f32 %v565, 0.3816
  %v618 = vsub.f32 %v566, 0.3816
  %v619 = vsub.f32 %v567, 0.3816
  %v620 = vmul.f32 %v28, %v616
  %v621 = vmul.f32 %v29, %v617
  %v622 = vmul.f32 %v30, %v618
  %v623 = vmul.f32 %v31, %v619
  %v624 = vsub.f32 %v612, %v620
  %v625 = vsub.f32 %v613, %v621
  %v626 = vsub.f32 %v614, %v622
  %v627 = vsub.f32 %v615, %v623
  %v628 = vsub.f32 %v432, %v508
  %v629 = vsub.f32 %v433, %v509
  %v630 = vsub.f32 %v434, %v510
  %v631 = vsub.f32 %v435, %v511
  %v632 = vadd.f32 %v628, %v600
  %v633 = vadd.f32 %v629, %v601
  %v634 = vadd.f32 %v630, %v602
  %v635 = vadd.f32 %v631, %v603
  %v636 = vmul.f32 %v632, 1800.0
  %v637 = vmul.f32 %v633, 1800.0
  %v638 = vmul.f32 %v634, 1800.0
  %v639 = vmul.f32 %v635, 1800.0
  %v640 = vadd.f32 %v372, %v636
  %v641 = vadd.f32 %v373, %v637
  %v642 = vadd.f32 %v374, %v638
  %v643 = vadd.f32 %v375, %v639
  %v644 = vsub.f32 %v456, %v532
  %v645 = vsub.f32 %v457, %v533
  %v646 = vsub.f32 %v458, %v534
  %v647 = vsub.f32 %v459, %v535
  %v648 = vadd.f32 %v644, %v624
  %v649 = vadd.f32 %v645, %v625
  %v650 = vadd.f32 %v646, %v626
  %v651 = vadd.f32 %v647, %v627
  %v652 = vmul.f32 %v648, 1800.0
  %v653 = vmul.f32 %v649, 1800.0
  %v654 = vmul.f32 %v650, 1800.0
  %v655 = vmul.f32 %v651, 1800.0
  %v656 = vadd.f32 %v396, %v652
  %v657 = vadd.f32 %v397, %v653
  %v658 = vadd.f32 %v398, %v654
  %v659 = vadd.f32 %v399, %v655
  %v660 = vrcp.pop %v656
  %v661 = vmul.f32 -5.0, %v660
  %v662 = vrcp.pop %v657
  %v663 = vmul.f32 -5.0, %v662
  %v664 = vrcp.pop %v658
  %v665 = vmul.f32 -5.0, %v664
  %v666 = vrcp.pop %v659
  %v667 = vmul.f32 -5.0, %v666
  %v668 = vmul.f32 %v661, 1.442695
  %v669 = vpow.pop %v668
  %v670 = vmul.f32 %v663, 1.442695
  %v671 = vpow.pop %v670
  %v672 = vmul.f32 %v665, 1.442695
  %v673 = vpow.pop %v672
  %v674 = vmul.f32 %v667, 1.442695
  %v675 = vpow.pop %v674
  %v676 = vmul.f32 %v669, 0.083333336
  %v677 = vmul.f32 %v671, 0.083333336
  %v678 = vmul.f32 %v673, 0.083333336
  %v679 = vmul.f32 %v675, 0.083333336
  %v680 = vmul.f32 %v640, %v676
  %v681 = vmul.f32 %v641, %v677
  %v682 = vmul.f32 %v642, %v678
  %v683 = vmul.f32 %v643, %v679
  %v684 = vsub.f32 1.0, %v640
  %v685 = vsub.f32 1.0, %v641
  %v686 = vsub.f32 1.0, %v642
  %v687 = vsub.f32 1.0, %v643
  %v688 = vmul.f32 %v684, %v24
  %v689 = vmul.f32 %v685, %v25
  %v690 = vmul.f32 %v686, %v26
  %v691 = vmul.f32 %v687, %v27
  %v692 = vsub.f32 %v688, %v680
  %v693 = vsub.f32 %v689, %v681
  %v694 = vsub.f32 %v690, %v682
  %v695 = vsub.f32 %v691, %v683
  %v696 = vsub.f32 0.3947, %v656
  %v697 = vsub.f32 0.3947, %v657
  %v698 = vsub.f32 0.3947, %v658
  %v699 = vsub.f32 0.3947, %v659
  %v700 = vmul.f32 %v696, %v24
  %v701 = vmul.f32 %v697, %v25
  %v702 = vmul.f32 %v698, %v26
  %v703 = vmul.f32 %v699, %v27
  %v704 = vadd.f32 %v700, %v680
  %v705 = vadd.f32 %v701, %v681
  %v706 = vadd.f32 %v702, %v682
  %v707 = vadd.f32 %v703, %v683
  %v708 = vsub.f32 %v656, 0.3816
  %v709 = vsub.f32 %v657, 0.3816
  %v710 = vsub.f32 %v658, 0.3816
  %v711 = vsub.f32 %v659, 0.3816
  %v712 = vmul.f32 %v28, %v708
  %v713 = vmul.f32 %v29, %v709
  %v714 = vmul.f32 %v30, %v710
  %v715 = vmul.f32 %v31, %v711
  %v716 = vsub.f32 %v704, %v712
  %v717 = vsub.f32 %v705, %v713
  %v718 = vsub.f32 %v706, %v714
  %v719 = vsub.f32 %v707, %v715
  %v720 = vadd.f32 %v508, %v600
  %v721 = vadd.f32 %v509, %v601
  %v722 = vadd.f32 %v510, %v602
  %v723 = vadd.f32 %v511, %v603
  %v724 = vmul.f32 %v720, 3.0
  %v725 = vmul.f32 %v721, 3.0
  %v726 = vmul.f32 %v722, 3.0
  %v727 = vmul.f32 %v723, 3.0
  %v728 = vadd.f32 %v432, %v724
  %v729 = vadd.f32 %v433, %v725
  %v730 = vadd.f32 %v434, %v726
  %v731 = vadd.f32 %v435, %v727
  %v732 = vadd.f32 %v728, %v692
  %v733 = vadd.f32 %v729, %v693
  %v734 = vadd.f32 %v730, %v694
  %v735 = vadd.f32 %v731, %v695
  %v736 = vmul.f32 %v732, 225.0
  %v737 = vmul.f32 %v733, 225.0
  %v738 = vmul.f32 %v734, 225.0
  %v739 = vmul.f32 %v735, 225.0
  %v740 = vadd.f32 %v372, %v736
  %v741 = vadd.f32 %v373, %v737
  %v742 = vadd.f32 %v374, %v738
  %v743 = vadd.f32 %v375, %v739
  %v744 = vadd.f32 %v532, %v624
  %v745 = vadd.f32 %v533, %v625
  %v746 = vadd.f32 %v534, %v626
  %v747 = vadd.f32 %v535, %v627
  %v748 = vmul.f32 %v744, 3.0
  %v749 = vmul.f32 %v745, 3.0
  %v750 = vmul.f32 %v746, 3.0
  %v751 = vmul.f32 %v747, 3.0
  %v752 = vadd.f32 %v456, %v748
  %v753 = vadd.f32 %v457, %v749
  %v754 = vadd.f32 %v458, %v750
  %v755 = vadd.f32 %v459, %v751
  %v756 = vadd.f32 %v752, %v716
  %v757 = vadd.f32 %v753, %v717
  %v758 = vadd.f32 %v754, %v718
  %v759 = vadd.f32 %v755, %v719
  %v760 = vmul.f32 %v756, 225.0
  %v761 = vmul.f32 %v757, 225.0
  %v762 = vmul.f32 %v758, 225.0
  %v763 = vmul.f32 %v759, 225.0
  %v764 = vadd.f32 %v396, %v760
  %v765 = vadd.f32 %v397, %v761
  %v766 = vadd.f32 %v398, %v762
  %v767 = vadd.f32 %v399, %v763
  %768 = vst [vmem:[%s1] sm:$0xff] %v740
  %769 = vst [vmem:[%s1 + $0x8] sm:$0xff] %v741
  %770 = vst [vmem:[%s1 + $0x10] sm:$0xff] %v742
  %771 = vst [vmem:[%s1 + $0x18] sm:$0xff] %v743
  %772 = vst [vmem:[%s1 + $0x20] sm:$0xff] %v764
  %773 = vst [vmem:[%s1 + $0x28] sm:$0xff] %v765
  %774 = vst [vmem:[%s1 + $0x30] sm:$0xff] %v766
  %775 = vst [vmem:[%s1 + $0x38] sm:$0xff] %v767
  // Predicated region
  $region6: #{fwd.1} parent=0 // pred_check
    _
  $region7: #{fwd.1} parent=0 // pred_check_branch
    %777 = sbr.rel (0) target = $region9
  $region8: #{fwd.1} parent=0 // pred_region
    _
  $region9: #{fwd.1} parent=0 // pred_fallthru
    _
  // Predicated region
  $region10: #{fwd.1} parent=0 // pred_check
    _
  $region11: #{fwd.1} parent=0 // pred_check_branch
    %779 = sbr.rel (0) target = $region13
  $region12: #{fwd.1} parent=0 // pred_region
    _
  $region13: #{fwd.1} parent=0 // pred_fallthru
    _

</llo_original>
